<compile_context>
chip_gen: v6e
topology: v6e:2x2x1
jax: 0.10.0
libtpu: 0.0.40
codegen_flags: <defaults>
</compile_context>

<pallas_src>
import functools
import math

import jax
import jax.numpy as jnp
from jax.experimental import pallas as pl
from jax.experimental.pallas import tpu as pltpu

NEG_SLOPE = 0.4   # nn.LeakyReLU(negative_slope=0.4)
LANE = 128
SUBLANE = 8
MAX_BATCH_TILE = 256


def _round_up(n, m):
    return ((n + m - 1) // m) * m


def _apply_activation(y, activation):
    if activation == "lrelu":
        return jnp.where(y >= 0.0, y, NEG_SLOPE * y)
    if activation == "relu":
        return jnp.maximum(y, 0.0)
    if activation == "tanh":
        return jnp.tanh(y)
    if activation == "sigmoid":
        return jax.nn.sigmoid(y)
    raise ValueError(f"unknown activation: {activation}")


def _mlp_fused_kernel(x_ref, w_ref, b_ref, o_ref, *, num_layers, activation):
    # One batch tile: chain all layers back-to-back on the MXU, activations
    # never leave on-chip memory.
    h = x_ref[...].astype(jnp.float32)
    for layer in range(num_layers):               # static unroll
        y = jnp.dot(h, w_ref[layer], preferred_element_type=jnp.float32)
        y = y + b_ref[layer]                      # (TB, P) + (1, P) broadcast
        h = _apply_activation(y, activation)
    o_ref[...] = h.astype(o_ref.dtype)


def init_mlp_params(hidden_sizes, key):
    """Xavier-uniform weights (zero bias), matching nn.init.xavier_uniform_ on a
    PyTorch (out, in) weight; stored transposed as (in, out) so y = x @ W + b."""
    params = []
    for i in range(len(hidden_sizes) - 1):
        d_in, d_out = hidden_sizes[i], hidden_sizes[i + 1]
        key, sub = jax.random.split(key)
        bound = math.sqrt(6.0 / (d_in + d_out))
        w = jax.random.uniform(
            sub, (d_in, d_out), dtype=jnp.float32, minval=-bound, maxval=bound
        )
        b = jnp.zeros((d_out,), dtype=jnp.float32)
        params.append((w, b))
    return params


def pack_params(params):
    """Stack per-layer (w, b) into one zero-padded, lane-dense slab.

    Returns w_stack (L, P, P), b_stack (L, 1, P), and the final true output width.
    Zero padding keeps the math exact: padded input columns hit zero weight rows,
    padded output columns get zero weight cols + zero bias.
    """
    widths = [params[0][0].shape[0]] + [w.shape[1] for w, _ in params]
    P = _round_up(max(widths), LANE)
    L = len(params)
    w_stack = jnp.zeros((L, P, P), jnp.float32)
    b_stack = jnp.zeros((L, 1, P), jnp.float32)
    for layer, (w, b) in enumerate(params):
        d_in, d_out = w.shape
        w_stack = w_stack.at[layer, :d_in, :d_out].set(w)
        b_stack = b_stack.at[layer, 0, :d_out].set(b)
    return w_stack, b_stack, widths[-1]


def mlp_forward(x, w_stack, b_stack, d_out_final, activation="lrelu"):
    """Fused MLP forward. x: (B, D_in) f32. Returns (B, d_out_final) f32."""
    B, D_in = x.shape
    L, P, _ = w_stack.shape

    # Pad batch to a sublane multiple; tile it if large.
    B_pad = _round_up(B, SUBLANE)
    if B_pad > MAX_BATCH_TILE:
        TB = MAX_BATCH_TILE
        B_pad = _round_up(B_pad, TB)
    else:
        TB = B_pad

    # Lane-dense, zero-padded activation slab.
    x_pad = jnp.zeros((B_pad, P), jnp.float32).at[:B, :D_in].set(x)

    kernel = functools.partial(
        _mlp_fused_kernel, num_layers=L, activation=activation
    )

    out = pl.pallas_call(
        kernel,
        out_shape=jax.ShapeDtypeStruct((B_pad, P), jnp.float32),
        grid=(B_pad // TB,),
        in_specs=[
            pl.BlockSpec((TB, P), lambda i: (i, 0)),        # activations stream
            pl.BlockSpec((L, P, P), lambda i: (0, 0, 0)),   # weights pinned in VMEM
            pl.BlockSpec((L, 1, P), lambda i: (0, 0, 0)),   # biases pinned in VMEM
        ],
        out_specs=pl.BlockSpec((TB, P), lambda i: (i, 0)),
        compiler_params=pltpu.CompilerParams(
            dimension_semantics=("parallel",)               # shards across v7x's 2 TCs
        ),
    )(x_pad, w_stack, b_stack)

    return out[:B, :d_out_final]


def mlp_reference(x, params, activation="lrelu"):
    """Pure-JAX reference (unpadded) for correctness checking."""
    for w, b in params:
        y = x @ w + b
        x = _apply_activation(y, activation)
    return x


if __name__ == "__main__":
    key = jax.random.PRNGKey(0)
    hidden_sizes = [32, 64, 128, 32]   # MLP(hidden_size=[32, 64, 128, 32])
    batch = 8

    key, xkey = jax.random.split(key)
    x = jax.random.normal(xkey, (batch, hidden_sizes[0]), dtype=jnp.float32)

    params = init_mlp_params(hidden_sizes, key)
    w_stack, b_stack, d_out_final = pack_params(params)

    out = mlp_forward(x, w_stack, b_stack, d_out_final, activation="lrelu")
    out = jax.block_until_ready(out)

    ref = mlp_reference(x, params, activation="lrelu")
    assert out.shape == (batch, hidden_sizes[-1])
    assert jnp.allclose(out, ref, atol=1e-5, rtol=1e-5)

    print("KERNEL_OK")
</pallas_src>

<mosaic_0001>
module attributes {stable_mosaic.version = 11 : i64} {
  func.func @_mlp_fused_kernel(%arg0: i32, %arg1: memref<8x128xf32, #tpu.memory_space<vmem>>, %arg2: memref<3x128x128xf32, #tpu.memory_space<vmem>>, %arg3: memref<3x1x128xf32, #tpu.memory_space<vmem>>, %arg4: memref<8x128xf32, #tpu.memory_space<vmem>>) attributes {dimension_semantics = [#tpu.dimension_semantics<parallel>], iteration_bounds = array<i64: 1>, scalar_prefetch = 0 : i64, scratch_operands = 0 : i64, tpu.core_type = #tpu.core_type<tc>, window_params = [{transform_indices = @transform_0, window_bounds = array<i64: 8, 128>}, {pipeline_mode = #tpu.pipeline_mode<synchronous>, transform_indices = @transform_1, window_bounds = array<i64: 3, 128, 128>}, {pipeline_mode = #tpu.pipeline_mode<synchronous>, transform_indices = @transform_2, window_bounds = array<i64: 3, 1, 128>}, {transform_indices = @transform_3, window_bounds = array<i64: 8, 128>}]} {
    %c0 = arith.constant 0 : index
    %c0_0 = arith.constant 0 : index
    %0 = vector.load %arg1[%c0, %c0_0] : memref<8x128xf32, #tpu.memory_space<vmem>>, vector<8x128xf32>
    %c0_1 = arith.constant 0 : index
    %c0_2 = arith.constant 0 : index
    %c0_3 = arith.constant 0 : index
    %1 = vector.load %arg2[%c0_1, %c0_2, %c0_3] : memref<3x128x128xf32, #tpu.memory_space<vmem>>, vector<1x128x128xf32>
    %2 = vector.shape_cast %1 : vector<1x128x128xf32> to vector<128x128xf32>
    %cst = arith.constant dense<0.000000e+00> : vector<8x128xf32>
    %3 = tpu.matmul %0, %2, %cst {dimension_numbers = #tpu.dot_dimension_numbers<[1], [0], [0], [1], [0, 0, 1, 1], [], []>} : vector<8x128xf32>, vector<128x128xf32>, vector<8x128xf32> -> vector<8x128xf32>
    %c0_4 = arith.constant 0 : index
    %c0_5 = arith.constant 0 : index
    %c0_6 = arith.constant 0 : index
    %4 = vector.load %arg3[%c0_4, %c0_5, %c0_6] : memref<3x1x128xf32, #tpu.memory_space<vmem>>, vector<1x1x128xf32>
    %5 = vector.shape_cast %4 : vector<1x1x128xf32> to vector<1x128xf32>
    %6 = vector.broadcast %5 : vector<1x128xf32> to vector<8x128xf32>
    %7 = arith.addf %3, %6 : vector<8x128xf32>
    %cst_7 = arith.constant 0.000000e+00 : f32
    %8 = vector.broadcast %cst_7 : f32 to vector<8x128xf32>
    %9 = arith.cmpf oge, %7, %8 : vector<8x128xf32>
    %cst_8 = arith.constant 4.000000e-01 : f32
    %10 = vector.broadcast %cst_8 : f32 to vector<8x128xf32>
    %11 = arith.mulf %10, %7 : vector<8x128xf32>
    %12 = arith.select %9, %7, %11 : vector<8x128xi1>, vector<8x128xf32>
    %c1 = arith.constant 1 : index
    %c0_9 = arith.constant 0 : index
    %c0_10 = arith.constant 0 : index
    %13 = vector.load %arg2[%c1, %c0_9, %c0_10] : memref<3x128x128xf32, #tpu.memory_space<vmem>>, vector<1x128x128xf32>
    %14 = vector.shape_cast %13 : vector<1x128x128xf32> to vector<128x128xf32>
    %cst_11 = arith.constant dense<0.000000e+00> : vector<8x128xf32>
    %15 = tpu.matmul %12, %14, %cst_11 {dimension_numbers = #tpu.dot_dimension_numbers<[1], [0], [0], [1], [0, 0, 1, 1], [], []>} : vector<8x128xf32>, vector<128x128xf32>, vector<8x128xf32> -> vector<8x128xf32>
    %c1_12 = arith.constant 1 : index
    %c0_13 = arith.constant 0 : index
    %c0_14 = arith.constant 0 : index
    %16 = vector.load %arg3[%c1_12, %c0_13, %c0_14] : memref<3x1x128xf32, #tpu.memory_space<vmem>>, vector<1x1x128xf32>
    %17 = vector.shape_cast %16 : vector<1x1x128xf32> to vector<1x128xf32>
    %18 = vector.broadcast %17 : vector<1x128xf32> to vector<8x128xf32>
    %19 = arith.addf %15, %18 : vector<8x128xf32>
    %cst_15 = arith.constant 0.000000e+00 : f32
    %20 = vector.broadcast %cst_15 : f32 to vector<8x128xf32>
    %21 = arith.cmpf oge, %19, %20 : vector<8x128xf32>
    %cst_16 = arith.constant 4.000000e-01 : f32
    %22 = vector.broadcast %cst_16 : f32 to vector<8x128xf32>
    %23 = arith.mulf %22, %19 : vector<8x128xf32>
    %24 = arith.select %21, %19, %23 : vector<8x128xi1>, vector<8x128xf32>
    %c2 = arith.constant 2 : index
    %c0_17 = arith.constant 0 : index
    %c0_18 = arith.constant 0 : index
    %25 = vector.load %arg2[%c2, %c0_17, %c0_18] : memref<3x128x128xf32, #tpu.memory_space<vmem>>, vector<1x128x128xf32>
    %26 = vector.shape_cast %25 : vector<1x128x128xf32> to vector<128x128xf32>
    %cst_19 = arith.constant dense<0.000000e+00> : vector<8x128xf32>
    %27 = tpu.matmul %24, %26, %cst_19 {dimension_numbers = #tpu.dot_dimension_numbers<[1], [0], [0], [1], [0, 0, 1, 1], [], []>} : vector<8x128xf32>, vector<128x128xf32>, vector<8x128xf32> -> vector<8x128xf32>
    %c2_20 = arith.constant 2 : index
    %c0_21 = arith.constant 0 : index
    %c0_22 = arith.constant 0 : index
    %28 = vector.load %arg3[%c2_20, %c0_21, %c0_22] : memref<3x1x128xf32, #tpu.memory_space<vmem>>, vector<1x1x128xf32>
    %29 = vector.shape_cast %28 : vector<1x1x128xf32> to vector<1x128xf32>
    %30 = vector.broadcast %29 : vector<1x128xf32> to vector<8x128xf32>
    %31 = arith.addf %27, %30 : vector<8x128xf32>
    %cst_23 = arith.constant 0.000000e+00 : f32
    %32 = vector.broadcast %cst_23 : f32 to vector<8x128xf32>
    %33 = arith.cmpf oge, %31, %32 : vector<8x128xf32>
    %cst_24 = arith.constant 4.000000e-01 : f32
    %34 = vector.broadcast %cst_24 : f32 to vector<8x128xf32>
    %35 = arith.mulf %34, %31 : vector<8x128xf32>
    %36 = arith.select %33, %31, %35 : vector<8x128xi1>, vector<8x128xf32>
    %c0_25 = arith.constant 0 : index
    %c0_26 = arith.constant 0 : index
    %37 = vector.load %arg4[%c0_25, %c0_26] : memref<8x128xf32, #tpu.memory_space<vmem>>, vector<8x128xf32>
    tpu.vector_store %arg4[%c0_25, %c0_26], %36 {strides = array<i32>} : memref<8x128xf32, #tpu.memory_space<vmem>>, vector<8x128xf32>,
    return
  }
  func.func @transform_0(%arg0: i32) -> (i32, i32) {
    %c0_i32 = arith.constant 0 : i32
    %c0_i32_0 = arith.constant 0 : i32
    return %arg0, %c0_i32 : i32, i32
  }
  func.func @transform_1(%arg0: i32) -> (i32, i32, i32) {
    %c0_i32 = arith.constant 0 : i32
    %c0_i32_0 = arith.constant 0 : i32
    %c0_i32_1 = arith.constant 0 : i32
    %c0_i32_2 = arith.constant 0 : i32
    return %c0_i32, %c0_i32_0, %c0_i32_1 : i32, i32, i32
  }
  func.func @transform_2(%arg0: i32) -> (i32, i32, i32) {
    %c0_i32 = arith.constant 0 : i32
    %c0_i32_0 = arith.constant 0 : i32
    %c0_i32_1 = arith.constant 0 : i32
    %c0_i32_2 = arith.constant 0 : i32
    return %c0_i32, %c0_i32_0, %c0_i32_1 : i32, i32, i32
  }
  func.func @transform_3(%arg0: i32) -> (i32, i32) {
    %c0_i32 = arith.constant 0 : i32
    %c0_i32_0 = arith.constant 0 : i32
    return %arg0, %c0_i32 : i32, i32
  }
}

</mosaic_0001>

<llo_original>
// kernel: tpu_custom_call.1
$region0: #{tpu_custom_call.1}
  #allocation0 [shape = 'u32[]', space=smem, size = 0x4, offset = 0x4, fixed_abs, tag = 'smem constant byte address 0x4 - core index']
  #allocation1 [shape = 'u32[144,128]{1,0:T(1,128)}', space=vmem, size = 0x12000, scoped, tag = 'internal scratch']
  %s0 = inlined_call_operand.hbm [shape: f32[8,128], index: 0, kind: input, shape index: {}]
  %s1 = inlined_call_operand.hbm [shape: f32[3,128,128], index: 1, kind: input, shape index: {}]
  %s2 = inlined_call_operand.vmem [shape: f32[3,1,128], index: 2, kind: input, shape index: {}]
  %s3 = inlined_call_operand.hbm [shape: f32[8,128], index: 3, kind: output, shape index: {}]
  %s4 = sld [smem:[#allocation0]]
  $region30: #{tpu_custom_call.1} parent=0
    _
  %s6 = ssub.s32 1, %s4
  %s7 = scalar_select 0, %s6, %s4
  $region1: #{tpu_custom_call.1} parent=0
    #allocation2 [shape = 'u8[4096]{0}', space=vmem, size = 0x1000, scoped, tag = 'input window, operand 0, single buffered']
    #allocation3 [shape = 's32[1]{0}', space=sflag, size = 0x4, scoped, tag = 'scoped memory for tpu_custom_call.1']
    #allocation4 [shape = 's32[1]{0}', space=sflag, size = 0x4, scoped, tag = 'scoped memory for tpu_custom_call.1']
    #allocation5 [shape = 'u8[196608]{0}', space=vmem, size = 0x30000, scoped, tag = 'input window, operand 1, single buffered']
    #allocation6 [shape = 's32[1]{0}', space=sflag, size = 0x4, scoped, tag = 'scoped memory for tpu_custom_call.1']
    #allocation7 [shape = 'u8[4096]{0}', space=vmem, size = 0x1000, scoped, tag = 'output window, operand 0, single buffered']
    %8 = vsyncpa [#allocation3], 0
    %9 = vsyncpa [#allocation6], 0
    %10 = vsyncpa [#allocation4], 0
    // Predicated region
    $region2: #{tpu_custom_call.1} parent=1 // pred_check
      _
    $region3: #{tpu_custom_call.1} parent=1 // pred_check_branch
      %12 = sbr.rel (0) target = $region5
    $region4: #{tpu_custom_call.1} parent=1 // pred_region
      %s14 = ssub.s32 128, 128
      %15 = vsyncadd [#allocation3], %s14
      %s17 = sshll.u32 [#allocation2], 4
      %s18 = int_to_ptr.vmem [resolvable:$true] %s17
      %20 = dma.hbm_to_vmem [thread:$0]  %s0, 128, %s18, [#allocation3]
    $region5: #{tpu_custom_call.1} parent=1 // pred_fallthru
      _
    // Predicated region
    $region6: #{tpu_custom_call.1} parent=1 // pred_check
      _
    $region7: #{tpu_custom_call.1} parent=1 // pred_check_branch
      %22 = sbr.rel (0) target = $region9
    $region8: #{tpu_custom_call.1} parent=1 // pred_region
      %s24 = ssub.s32 6144, 6144
      %25 = vsyncadd [#allocation6], %s24
      %s26 = sshll.u32 [#allocation5], 4
      %s27 = int_to_ptr.vmem [resolvable:$true] %s26
      %32 = dma.hbm_to_vmem [thread:$0]  %s1, 6144, %s27, [#allocation6], 128, 128, 8
    $region9: #{tpu_custom_call.1} parent=1 // pred_fallthru
      _
    // Predicated region
    $region10: #{tpu_custom_call.1} parent=1 // pred_check
      _
    $region11: #{tpu_custom_call.1} parent=1 // pred_check_branch
      %34 = sbr.rel (0) target = $region13
    $region12: #{tpu_custom_call.1} parent=1 // pred_region
      _
    $region13: #{tpu_custom_call.1} parent=1 // pred_fallthru
      _
    // Predicated region
    $region14: #{tpu_custom_call.1} parent=1 // pred_check
      _
    $region15: #{tpu_custom_call.1} parent=1 // pred_check_branch
      %36 = sbr.rel (0) target = $region17
    $region16: #{tpu_custom_call.1} parent=1 // pred_region
      %37 = dma.done [#allocation3], 128
    $region17: #{tpu_custom_call.1} parent=1 // pred_fallthru
      _
    // Predicated region
    $region18: #{tpu_custom_call.1} parent=1 // pred_check
      _
    $region19: #{tpu_custom_call.1} parent=1 // pred_check_branch
      %39 = sbr.rel (0) target = $region21
    $region20: #{tpu_custom_call.1} parent=1 // pred_region
      %40 = dma.done [#allocation6], 6144
    $region21: #{tpu_custom_call.1} parent=1 // pred_fallthru
      _
    %v41 = vld [vmem:[#allocation2] sm:$0xff]
    %v42 = vld [vmem:[#allocation5] sm:$0xff]
    %v43 = vld [vmem:[#allocation5 + $0x8] sm:$0xff]
    %v44 = vld [vmem:[#allocation5 + $0x10] sm:$0xff]
    %v45 = vld [vmem:[#allocation5 + $0x18] sm:$0xff]
    %v46 = vld [vmem:[#allocation5 + $0x20] sm:$0xff]
    %v47 = vld [vmem:[#allocation5 + $0x28] sm:$0xff]
    %v48 = vld [vmem:[#allocation5 + $0x30] sm:$0xff]
    %v49 = vld [vmem:[#allocation5 + $0x38] sm:$0xff]
    %v50 = vld [vmem:[#allocation5 + $0x40] sm:$0xff]
    %v51 = vld [vmem:[#allocation5 + $0x48] sm:$0xff]
    %v52 = vld [vmem:[#allocation5 + $0x50] sm:$0xff]
    %v53 = vld [vmem:[#allocation5 + $0x58] sm:$0xff]
    %v54 = vld [vmem:[#allocation5 + $0x60] sm:$0xff]
    %v55 = vld [vmem:[#allocation5 + $0x68] sm:$0xff]
    %v56 = vld [vmem:[#allocation5 + $0x70] sm:$0xff]
    %v57 = vld [vmem:[#allocation5 + $0x78] sm:$0xff]
    %v58 = vld [vmem:[%s2] sm:$0x1]
    %v60 = vlaneseq
    %v61 = vshrl.u32 %v60, 7
    %v62 = vsub.s32 0, %v61
    %v63 = vrot.slane %v58, %v62
    %65 = vmatprep.subr.mxu0 0.0
    %66 = vmatpush1.msra.mxu0 %v57
    %67 = vmatprep.subr.mxu0 0.0
    %68 = vmatpush1.msra.mxu0 %v56
    %69 = vmatprep.subr.mxu0 0.0
    %70 = vmatpush1.msra.mxu0 %v55
    %71 = vmatprep.subr.mxu0 0.0
    %72 = vmatpush1.msra.mxu0 %v54
    %73 = vmatprep.subr.mxu0 0.0
    %74 = vmatpush1.msra.mxu0 %v53
    %75 = vmatprep.subr.mxu0 0.0
    %76 = vmatpush1.msra.mxu0 %v52
    %77 = vmatprep.subr.mxu0 0.0
    %78 = vmatpush1.msra.mxu0 %v51
    %79 = vmatprep.subr.mxu0 0.0
    %80 = vmatpush1.msra.mxu0 %v50
    %81 = vmatprep.subr.mxu0 0.0
    %82 = vmatpush1.msra.mxu0 %v49
    %83 = vmatprep.subr.mxu0 0.0
    %84 = vmatpush1.msra.mxu0 %v48
    %85 = vmatprep.subr.mxu0 0.0
    %86 = vmatpush1.msra.mxu0 %v47
    %87 = vmatprep.subr.mxu0 0.0
    %88 = vmatpush1.msra.mxu0 %v46
    %89 = vmatprep.subr.mxu0 0.0
    %90 = vmatpush1.msra.mxu0 %v45
    %91 = vmatprep.subr.mxu0 0.0
    %92 = vmatpush1.msra.mxu0 %v44
    %93 = vmatprep.subr.mxu0 0.0
    %94 = vmatpush1.msra.mxu0 %v43
    %95 = vmatprep.subr.mxu0 0.0
    %96 = vmatpush1.msra.mxu0 %v42
    %97 = vmatprep.subr.mxu0 0.0
    %98 = vmatpush2.msra.mxu0 0.0
    %99 = vmatprep.subr.mxu0 0.0
    %100 = vmatpush2.msra.mxu0 0.0
    %101 = vmatprep.subr.mxu0 0.0
    %102 = vmatpush2.msra.mxu0 0.0
    %103 = vmatprep.subr.mxu0 0.0
    %104 = vmatpush2.msra.mxu0 0.0
    %105 = vmatprep.subr.mxu0 0.0
    %106 = vmatpush2.msra.mxu0 0.0
    %107 = vmatprep.subr.mxu0 0.0
    %108 = vmatpush2.msra.mxu0 0.0
    %109 = vmatprep.subr.mxu0 0.0
    %110 = vmatpush2.msra.mxu0 0.0
    %111 = vmatprep.subr.mxu0 0.0
    %112 = vmatpush2.msra.mxu0 0.0
    %113 = vmatprep.subr.mxu0 0.0
    %114 = vmatpush2.msra.mxu0 0.0
    %115 = vmatprep.subr.mxu0 0.0
    %116 = vmatpush2.msra.mxu0 0.0
    %117 = vmatprep.subr.mxu0 0.0
    %118 = vmatpush2.msra.mxu0 0.0
    %119 = vmatprep.subr.mxu0 0.0
    %120 = vmatpush2.msra.mxu0 0.0
    %121 = vmatprep.subr.mxu0 0.0
    %122 = vmatpush2.msra.mxu0 0.0
    %123 = vmatprep.subr.mxu0 0.0
    %124 = vmatpush2.msra.mxu0 0.0
    %125 = vmatprep.subr.mxu0 0.0
    %126 = vmatpush2.msra.mxu0 0.0
    %127 = vmatprep.subr.mxu0 0.0
    %128 = vmatpush2.msra.mxu0 0.0
    %129 = vmatprep.mubr.f32.mxu0 0.0
    %130 = vmatmul.mubr.f32.gmra.mxu0 %v41
    %v131 = vpop.f32.mrf.mxu0
    %v132 = vadd.f32 %v63, %v131
    %v133 = vpop.f32.mrf.mxu0
    %134 = vdwg.mxu0
    %vm135 = vcmp.ge.f32.partialorder %v132, 0.0
    %v136 = vmul.f32 %v132, 0.4
    %v137 = vsel %vm135, %v132, %v136
    %s138 = scalar_lea.vmem [#allocation5], 128
    %v139 = vld [vmem:[%s138] sm:$0xff]
    %v140 = vld [vmem:[%s138 + $0x8] sm:$0xff]
    %v141 = vld [vmem:[%s138 + $0x10] sm:$0xff]
    %v142 = vld [vmem:[%s138 + $0x18] sm:$0xff]
    %v143 = vld [vmem:[%s138 + $0x20] sm:$0xff]
    %v144 = vld [vmem:[%s138 + $0x28] sm:$0xff]
    %v145 = vld [vmem:[%s138 + $0x30] sm:$0xff]
    %v146 = vld [vmem:[%s138 + $0x38] sm:$0xff]
    %v147 = vld [vmem:[%s138 + $0x40] sm:$0xff]
    %v148 = vld [vmem:[%s138 + $0x48] sm:$0xff]
    %v149 = vld [vmem:[%s138 + $0x50] sm:$0xff]
    %v150 = vld [vmem:[%s138 + $0x58] sm:$0xff]
    %v151 = vld [vmem:[%s138 + $0x60] sm:$0xff]
    %v152 = vld [vmem:[%s138 + $0x68] sm:$0xff]
    %v153 = vld [vmem:[%s138 + $0x70] sm:$0xff]
    %v154 = vld [vmem:[%s138 + $0x78] sm:$0xff]
    %s155 = scalar_lea.vmem %s2, 1
    %v156 = vld [vmem:[%s155] sm:$0x1]
    %v158 = vlaneseq
    %v159 = vshrl.u32 %v158, 7
    %v160 = vsub.s32 0, %v159
    %v161 = vrot.slane %v156, %v160
    %163 = vmatprep.subr.mxu0 0.0
    %164 = vmatpush1.msra.mxu0 %v154
    %165 = vmatprep.subr.mxu0 0.0
    %166 = vmatpush1.msra.mxu0 %v153
    %167 = vmatprep.subr.mxu0 0.0
    %168 = vmatpush1.msra.mxu0 %v152
    %169 = vmatprep.subr.mxu0 0.0
    %170 = vmatpush1.msra.mxu0 %v151
    %171 = vmatprep.subr.mxu0 0.0
    %172 = vmatpush1.msra.mxu0 %v150
    %173 = vmatprep.subr.mxu0 0.0
    %174 = vmatpush1.msra.mxu0 %v149
    %175 = vmatprep.subr.mxu0 0.0
    %176 = vmatpush1.msra.mxu0 %v148
    %177 = vmatprep.subr.mxu0 0.0
    %178 = vmatpush1.msra.mxu0 %v147
    %179 = vmatprep.subr.mxu0 0.0
    %180 = vmatpush1.msra.mxu0 %v146
    %181 = vmatprep.subr.mxu0 0.0
    %182 = vmatpush1.msra.mxu0 %v145
    %183 = vmatprep.subr.mxu0 0.0
    %184 = vmatpush1.msra.mxu0 %v144
    %185 = vmatprep.subr.mxu0 0.0
    %186 = vmatpush1.msra.mxu0 %v143
    %187 = vmatprep.subr.mxu0 0.0
    %188 = vmatpush1.msra.mxu0 %v142
    %189 = vmatprep.subr.mxu0 0.0
    %190 = vmatpush1.msra.mxu0 %v141
    %191 = vmatprep.subr.mxu0 0.0
    %192 = vmatpush1.msra.mxu0 %v140
    %193 = vmatprep.subr.mxu0 0.0
    %194 = vmatpush1.msra.mxu0 %v139
    %195 = vmatprep.subr.mxu0 0.0
    %196 = vmatpush2.msra.mxu0 0.0
    %197 = vmatprep.subr.mxu0 0.0
    %198 = vmatpush2.msra.mxu0 0.0
    %199 = vmatprep.subr.mxu0 0.0
    %200 = vmatpush2.msra.mxu0 0.0
    %201 = vmatprep.subr.mxu0 0.0
    %202 = vmatpush2.msra.mxu0 0.0
    %203 = vmatprep.subr.mxu0 0.0
    %204 = vmatpush2.msra.mxu0 0.0
    %205 = vmatprep.subr.mxu0 0.0
    %206 = vmatpush2.msra.mxu0 0.0
    %207 = vmatprep.subr.mxu0 0.0
    %208 = vmatpush2.msra.mxu0 0.0
    %209 = vmatprep.subr.mxu0 0.0
    %210 = vmatpush2.msra.mxu0 0.0
    %211 = vmatprep.subr.mxu0 0.0
    %212 = vmatpush2.msra.mxu0 0.0
    %213 = vmatprep.subr.mxu0 0.0
    %214 = vmatpush2.msra.mxu0 0.0
    %215 = vmatprep.subr.mxu0 0.0
    %216 = vmatpush2.msra.mxu0 0.0
    %217 = vmatprep.subr.mxu0 0.0
    %218 = vmatpush2.msra.mxu0 0.0
    %219 = vmatprep.subr.mxu0 0.0
    %220 = vmatpush2.msra.mxu0 0.0
    %221 = vmatprep.subr.mxu0 0.0
    %222 = vmatpush2.msra.mxu0 0.0
    %223 = vmatprep.subr.mxu0 0.0
    %224 = vmatpush2.msra.mxu0 0.0
    %225 = vmatprep.subr.mxu0 0.0
    %226 = vmatpush2.msra.mxu0 0.0
    %227 = vmatprep.mubr.f32.mxu0 0.0
    %228 = vmatmul.mubr.f32.gmra.mxu0 %v137
    %v229 = vpop.f32.mrf.mxu0
    %v230 = vadd.f32 %v161, %v229
    %v231 = vpop.f32.mrf.mxu0
    %232 = vdwg.mxu0
    %vm233 = vcmp.ge.f32.partialorder %v230, 0.0
    %v234 = vmul.f32 %v230, 0.4
    %v235 = vsel %vm233, %v230, %v234
    %s236 = scalar_lea.vmem [#allocation5], 256
    %v237 = vld [vmem:[%s236] sm:$0xff]
    %v238 = vld [vmem:[%s236 + $0x8] sm:$0xff]
    %v239 = vld [vmem:[%s236 + $0x10] sm:$0xff]
    %v240 = vld [vmem:[%s236 + $0x18] sm:$0xff]
    %v241 = vld [vmem:[%s236 + $0x20] sm:$0xff]
    %v242 = vld [vmem:[%s236 + $0x28] sm:$0xff]
    %v243 = vld [vmem:[%s236 + $0x30] sm:$0xff]
    %v244 = vld [vmem:[%s236 + $0x38] sm:$0xff]
    %v245 = vld [vmem:[%s236 + $0x40] sm:$0xff]
    %v246 = vld [vmem:[%s236 + $0x48] sm:$0xff]
    %v247 = vld [vmem:[%s236 + $0x50] sm:$0xff]
    %v248 = vld [vmem:[%s236 + $0x58] sm:$0xff]
    %v249 = vld [vmem:[%s236 + $0x60] sm:$0xff]
    %v250 = vld [vmem:[%s236 + $0x68] sm:$0xff]
    %v251 = vld [vmem:[%s236 + $0x70] sm:$0xff]
    %v252 = vld [vmem:[%s236 + $0x78] sm:$0xff]
    %s253 = scalar_lea.vmem %s2, 2
    %v254 = vld [vmem:[%s253] sm:$0x1]
    %v256 = vlaneseq
    %v257 = vshrl.u32 %v256, 7
    %v258 = vsub.s32 0, %v257
    %v259 = vrot.slane %v254, %v258
    %261 = vmatprep.subr.mxu0 0.0
    %262 = vmatpush1.msra.mxu0 %v252
    %263 = vmatprep.subr.mxu0 0.0
    %264 = vmatpush1.msra.mxu0 %v251
    %265 = vmatprep.subr.mxu0 0.0
    %266 = vmatpush1.msra.mxu0 %v250
    %267 = vmatprep.subr.mxu0 0.0
    %268 = vmatpush1.msra.mxu0 %v249
    %269 = vmatprep.subr.mxu0 0.0
    %270 = vmatpush1.msra.mxu0 %v248
    %271 = vmatprep.subr.mxu0 0.0
    %272 = vmatpush1.msra.mxu0 %v247
    %273 = vmatprep.subr.mxu0 0.0
    %274 = vmatpush1.msra.mxu0 %v246
    %275 = vmatprep.subr.mxu0 0.0
    %276 = vmatpush1.msra.mxu0 %v245
    %277 = vmatprep.subr.mxu0 0.0
    %278 = vmatpush1.msra.mxu0 %v244
    %279 = vmatprep.subr.mxu0 0.0
    %280 = vmatpush1.msra.mxu0 %v243
    %281 = vmatprep.subr.mxu0 0.0
    %282 = vmatpush1.msra.mxu0 %v242
    %283 = vmatprep.subr.mxu0 0.0
    %284 = vmatpush1.msra.mxu0 %v241
    %285 = vmatprep.subr.mxu0 0.0
    %286 = vmatpush1.msra.mxu0 %v240
    %287 = vmatprep.subr.mxu0 0.0
    %288 = vmatpush1.msra.mxu0 %v239
    %289 = vmatprep.subr.mxu0 0.0
    %290 = vmatpush1.msra.mxu0 %v238
    %291 = vmatprep.subr.mxu0 0.0
    %292 = vmatpush1.msra.mxu0 %v237
    %293 = vmatprep.subr.mxu0 0.0
    %294 = vmatpush2.msra.mxu0 0.0
    %295 = vmatprep.subr.mxu0 0.0
    %296 = vmatpush2.msra.mxu0 0.0
    %297 = vmatprep.subr.mxu0 0.0
    %298 = vmatpush2.msra.mxu0 0.0
    %299 = vmatprep.subr.mxu0 0.0
    %300 = vmatpush2.msra.mxu0 0.0
    %301 = vmatprep.subr.mxu0 0.0
    %302 = vmatpush2.msra.mxu0 0.0
    %303 = vmatprep.subr.mxu0 0.0
    %304 = vmatpush2.msra.mxu0 0.0
    %305 = vmatprep.subr.mxu0 0.0
    %306 = vmatpush2.msra.mxu0 0.0
    %307 = vmatprep.subr.mxu0 0.0
    %308 = vmatpush2.msra.mxu0 0.0
    %309 = vmatprep.subr.mxu0 0.0
    %310 = vmatpush2.msra.mxu0 0.0
    %311 = vmatprep.subr.mxu0 0.0
    %312 = vmatpush2.msra.mxu0 0.0
    %313 = vmatprep.subr.mxu0 0.0
    %314 = vmatpush2.msra.mxu0 0.0
    %315 = vmatprep.subr.mxu0 0.0
    %316 = vmatpush2.msra.mxu0 0.0
    %317 = vmatprep.subr.mxu0 0.0
    %318 = vmatpush2.msra.mxu0 0.0
    %319 = vmatprep.subr.mxu0 0.0
    %320 = vmatpush2.msra.mxu0 0.0
    %321 = vmatprep.subr.mxu0 0.0
    %322 = vmatpush2.msra.mxu0 0.0
    %323 = vmatprep.subr.mxu0 0.0
    %324 = vmatpush2.msra.mxu0 0.0
    %325 = vmatprep.mubr.f32.mxu0 0.0
    %326 = vmatmul.mubr.f32.gmra.mxu0 %v235
    %v327 = vpop.f32.mrf.mxu0
    %v328 = vadd.f32 %v259, %v327
    %v329 = vpop.f32.mrf.mxu0
    %330 = vdwg.mxu0
    %vm331 = vcmp.ge.f32.partialorder %v328, 0.0
    %v332 = vmul.f32 %v328, 0.4
    %v333 = vsel %vm331, %v328, %v332
    %334 = vst [vmem:[#allocation7] sm:$0xff] %v333
    // Predicated region
    $region22: #{tpu_custom_call.1} parent=1 // pred_check
      _
    $region23: #{tpu_custom_call.1} parent=1 // pred_check_branch
      %336 = sbr.rel (0) target = $region25
    $region24: #{tpu_custom_call.1} parent=1 // pred_region
      %s338 = ssub.s32 128, 128
      %339 = vsyncadd [#allocation4], %s338
      %s341 = sshll.u32 [#allocation7], 4
      %s342 = int_to_ptr.vmem [resolvable:$true] %s341
      %344 = dma.vmem_to_hbm [thread:$0]  %s342, 128, %s3, [#allocation4]
    $region25: #{tpu_custom_call.1} parent=1 // pred_fallthru
      _
    // Predicated region
    $region26: #{tpu_custom_call.1} parent=1 // pred_check
      _
    $region27: #{tpu_custom_call.1} parent=1 // pred_check_branch
      %346 = sbr.rel (0) target = $region29
    $region28: #{tpu_custom_call.1} parent=1 // pred_region
      %347 = dma.done [#allocation4], 128
    $region29: #{tpu_custom_call.1} parent=1 // pred_fallthru
      _
    %348 = vsyncpa [#allocation3], 1
    %349 = vsyncpa [#allocation6], 1
    %350 = vsyncpa [#allocation4], 1

</llo_original>
